<compile_context>
chip_gen: v7x
topology: tpu7x:2x2x1
jax: 0.10.0
libtpu: 0.0.40
codegen_flags: <defaults>
</compile_context>

<pallas_src>
import numpy as np
import jax
import jax.numpy as jnp
from jax.experimental import pallas as pl
from jax.experimental.pallas import tpu as pltpu


def _round_up(x, m):
    return (x + m - 1) // m * m


def _cdiv(a, b):
    return -(-a // b)


def _is_single_tensorcore_chip():
    """v5e / v6e have one TensorCore per chip; everything else is treated as 2."""
    try:
        kind = jax.devices()[0].device_kind.lower()
    except Exception:
        return False
    return any(tag in kind for tag in
               ("v5e", "v5 lite", "v5lite", "v6e", "v6 lite", "v6lite"))


# ---------------------------------------------------------------------------
# Hot kernel: streaming FiLM + anchor projection over large frame tiles.
#   pos[t] = (gamma[vid[t]] * frames[t]) @ Wa + beta_anchor[vid[t]]
# gamma (B,d), beta_anchor (B,pq) and Wa (d,pq) are tiny grid-invariant inputs
# (constant index_map -> loaded into VMEM once).  The per-frame row selection
# is a static chain of VPU selects over the small video batch B — no MXU
# gather matmuls.
# ---------------------------------------------------------------------------
def _pos_kernel(frames_ref, idx_ref, gamma_ref, banchor_ref, wa_ref, pos_ref):
    f = frames_ref[...].astype(jnp.float32)            # (tile_t, d)
    idx = idx_ref[...]                                  # (tile_t, 1) int32
    gamma = gamma_ref[...].astype(jnp.float32)          # (B, d)
    banchor = banchor_ref[...]                           # (B, pq) float32

    n_videos = gamma.shape[0]
    gamma_f = gamma[0:1, :]                              # (1, d) -> broadcasts
    beta_f = banchor[0:1, :]                             # (1, pq)
    for b in range(1, n_videos):                         # static, small B
        sel = idx == b                                   # (tile_t, 1)
        gamma_f = jnp.where(sel, gamma[b:b + 1, :], gamma_f)
        beta_f = jnp.where(sel, banchor[b:b + 1, :], beta_f)

    x = gamma_f * f                                      # FiLM scale (VPU, f32)
    pos = jnp.dot(x.astype(wa_ref.dtype), wa_ref[...],
                  preferred_element_type=jnp.float32)    # anchor GEMM (MXU)
    pos_ref[...] = (pos + beta_f).astype(pos_ref.dtype)


def template_generator(frames_cls, videos_cls, durations, params, *,
                       tile_t_max=2048, stream_bf16=False):
    """Pallas implementation of TemplateGenerator.forward.

    frames_cls: (T_total, d_model) float32
    videos_cls: (B, d_model)       float32
    durations:  python list of ints, sum == T_total (must be static)
    Returns (pos_query (T_total, query_dim), temp_query (T_total, d_model)).
    """
    T, d = frames_cls.shape
    B = videos_cls.shape[0]
    pq = params["wa"].shape[1]
    out_dtype = frames_cls.dtype

    # ---- per-video projections: tiny matmuls -> plain XLA (per perf review) --
    gamma = jnp.tanh(videos_cls @ params["wg"] + params["bg"])         # (B, d)
    beta = jnp.tanh(videos_cls @ params["wb"] + params["bb"])          # (B, d)
    content = videos_cls @ params["wc"] + params["bc"]                 # (B, d)
    # Fold beta and the anchor bias into one per-video additive constant:
    #   (gamma*f + beta) @ Wa + ba == (gamma*f) @ Wa + (beta @ Wa + ba)
    beta_anchor = (beta @ params["wa"] + params["ba"]).astype(jnp.float32)

    # ---- static frame -> video index (durations are static python ints) ------
    vid_idx = np.repeat(np.arange(B, dtype=np.int32),
                        np.asarray(durations, dtype=np.int64))
    assert vid_idx.shape[0] == T

    # ---- chip-aware tile selection --------------------------------------------
    t8 = _round_up(T, 8)
    n_tiles = max(1, _cdiv(t8, max(8, tile_t_max)))
    if not _is_single_tensorcore_chip():
        # Multi-TensorCore chip (v4/v5p/v7x): balanced, equal-size tiles so both
        # cores get equal work (avoid a nearly-all-padding second tile).
        n_tiles = _round_up(max(n_tiles, 2), 2)
    tile_t = _round_up(_cdiv(t8, n_tiles), 8)
    grid_t = _cdiv(t8, tile_t)
    T_pad = grid_t * tile_t

    frames_pad = frames_cls
    idx_pad = vid_idx
    if T_pad != T:
        frames_pad = jnp.pad(frames_cls, ((0, T_pad - T), (0, 0)))
        idx_pad = np.pad(vid_idx, (0, T_pad - T))   # tail rows -> video 0 (sliced off)
    idx_col = jnp.asarray(idx_pad.reshape(T_pad, 1))

    # ---- optional bf16 streaming of the big inputs ----------------------------
    if stream_bf16:
        frames_in = frames_pad.astype(jnp.bfloat16)
        gamma_in = gamma.astype(jnp.bfloat16)
        wa_in = params["wa"].astype(jnp.bfloat16)
    else:
        frames_in = frames_pad.astype(jnp.float32)
        gamma_in = gamma.astype(jnp.float32)
        wa_in = params["wa"].astype(jnp.float32)

    row = lambda i: (i, 0)
    const = lambda i: (0, 0)

    pos_pad = pl.pallas_call(
        _pos_kernel,
        out_shape=jax.ShapeDtypeStruct((T_pad, pq), jnp.float32),
        grid=(grid_t,),
        in_specs=[
            pl.BlockSpec((tile_t, d), row),    # frames tile        (streamed)
            pl.BlockSpec((tile_t, 1), row),    # per-frame video id (streamed)
            pl.BlockSpec((B, d), const),       # gamma              (resident)
            pl.BlockSpec((B, pq), const),      # beta_anchor        (resident)
            pl.BlockSpec((d, pq), const),      # anchor weight      (resident)
        ],
        out_specs=pl.BlockSpec((tile_t, pq), row),
        compiler_params=pltpu.CompilerParams(
            dimension_semantics=("parallel",)),
    )(frames_in, idx_col, gamma_in, beta_anchor, wa_in)

    pos_query = pos_pad if T_pad == T else pos_pad[:T]
    pos_query = pos_query.astype(out_dtype)

    # temp_query is a pure per-frame broadcast of content[video]; an XLA gather
    # avoids doubling the kernel's HBM write traffic (copy-only work).
    temp_query = jnp.take(content, jnp.asarray(vid_idx), axis=0).astype(out_dtype)
    return pos_query, temp_query


def _init_params(key, d_model, query_dim):
    """Deterministic synthetic init mirroring nn.Linear shapes (stored (in,out))."""
    ks = jax.random.split(key, 8)

    def lin(kw, kb, din, dout):
        bound = 1.0 / np.sqrt(din)
        w = jax.random.uniform(kw, (din, dout), jnp.float32, -bound, bound)
        b = jax.random.uniform(kb, (1, dout), jnp.float32, -bound, bound)
        return w, b

    wc, bc = lin(ks[0], ks[1], d_model, d_model)    # content_proj
    wg, bg = lin(ks[2], ks[3], d_model, d_model)    # gamma_proj
    wb, bb = lin(ks[4], ks[5], d_model, d_model)    # beta_proj
    wa, ba = lin(ks[6], ks[7], d_model, query_dim)  # anchor_proj
    return dict(wc=wc, bc=bc, wg=wg, bg=bg, wb=wb, bb=bb, wa=wa, ba=ba)


def _reference(frames_cls, videos_cls, durations, p):
    gamma = jnp.tanh(videos_cls @ p["wg"] + p["bg"][0])
    beta = jnp.tanh(videos_cls @ p["wb"] + p["bb"][0])
    content = videos_cls @ p["wc"] + p["bc"][0]
    pos_list, temp_list = [], []
    off = 0
    for i, dur in enumerate(durations):
        f = frames_cls[off:off + dur]
        pos_list.append((gamma[i] * f + beta[i]) @ p["wa"] + p["ba"][0])
        temp_list.append(jnp.tile(content[i][None, :], (dur, 1)))
        off += dur
    return jnp.concatenate(pos_list, 0), jnp.concatenate(temp_list, 0)


if __name__ == "__main__":
    d_model = 32        # cfg.MODEL.STCAT.HIDDEN
    query_dim = 4       # cfg.MODEL.STCAT.QUERY_DIM
    durations = [10, 6]             # per-video frame counts, B = 2
    T = sum(durations)              # 16 total frames
    B = len(durations)

    key = jax.random.PRNGKey(0)
    k_f, k_v, k_p = jax.random.split(key, 3)
    frames_cls = jax.random.normal(k_f, (T, d_model), jnp.float32)
    videos_cls = jax.random.normal(k_v, (B, d_model), jnp.float32)
    params = _init_params(k_p, d_model, query_dim)

    pos_q, temp_q = template_generator(frames_cls, videos_cls, durations, params)
    jax.block_until_ready((pos_q, temp_q))

    ref_pos, ref_temp = _reference(frames_cls, videos_cls, durations, params)
    assert pos_q.shape == (T, query_dim) and temp_q.shape == (T, d_model)
    np.testing.assert_allclose(np.asarray(pos_q), np.asarray(ref_pos),
                               rtol=1e-5, atol=1e-5)
    np.testing.assert_allclose(np.asarray(temp_q), np.asarray(ref_temp),
                               rtol=1e-5, atol=1e-5)
    print("KERNEL_OK")
</pallas_src>

<mosaic_0001>
module attributes {stable_mosaic.version = 11 : i64} {
  func.func @_pos_kernel(%arg0: i32, %arg1: memref<8x32xf32, #tpu.memory_space<vmem>>, %arg2: memref<8x1xi32, #tpu.memory_space<vmem>>, %arg3: memref<2x32xf32, #tpu.memory_space<vmem>>, %arg4: memref<2x4xf32, #tpu.memory_space<vmem>>, %arg5: memref<32x4xf32, #tpu.memory_space<vmem>>, %arg6: memref<8x4xf32, #tpu.memory_space<vmem>>) attributes {dimension_semantics = [#tpu.dimension_semantics<parallel>], iteration_bounds = array<i64: 2>, scalar_prefetch = 0 : i64, scratch_operands = 0 : i64, tpu.core_type = #tpu.core_type<tc>, window_params = [{transform_indices = @transform_0, window_bounds = array<i64: 8, 32>}, {transform_indices = @transform_1, window_bounds = array<i64: 8, 1>}, {pipeline_mode = #tpu.pipeline_mode<synchronous>, transform_indices = @transform_2, window_bounds = array<i64: 2, 32>}, {pipeline_mode = #tpu.pipeline_mode<synchronous>, transform_indices = @transform_3, window_bounds = array<i64: 2, 4>}, {pipeline_mode = #tpu.pipeline_mode<synchronous>, transform_indices = @transform_4, window_bounds = array<i64: 32, 4>}, {transform_indices = @transform_5, window_bounds = array<i64: 8, 4>}]} {
    %c0 = arith.constant 0 : index
    %c0_0 = arith.constant 0 : index
    %0 = vector.load %arg1[%c0, %c0_0] : memref<8x32xf32, #tpu.memory_space<vmem>>, vector<8x32xf32>
    %c0_1 = arith.constant 0 : index
    %c0_2 = arith.constant 0 : index
    %1 = vector.load %arg2[%c0_1, %c0_2] : memref<8x1xi32, #tpu.memory_space<vmem>>, vector<8x1xi32>
    %c0_3 = arith.constant 0 : index
    %c0_4 = arith.constant 0 : index
    %2 = vector.load %arg3[%c0_3, %c0_4] : memref<2x32xf32, #tpu.memory_space<vmem>>, vector<2x32xf32>
    %c0_5 = arith.constant 0 : index
    %c0_6 = arith.constant 0 : index
    %3 = vector.load %arg4[%c0_5, %c0_6] : memref<2x4xf32, #tpu.memory_space<vmem>>, vector<2x4xf32>
    %4 = vector.extract_strided_slice %2 {offsets = [0, 0], sizes = [1, 32], strides = [1, 1]} : vector<2x32xf32> to vector<1x32xf32>
    %5 = vector.extract_strided_slice %3 {offsets = [0, 0], sizes = [1, 4], strides = [1, 1]} : vector<2x4xf32> to vector<1x4xf32>
    %c1_i32 = arith.constant 1 : i32
    %6 = vector.broadcast %c1_i32 : i32 to vector<8x1xi32>
    %7 = arith.cmpi eq, %1, %6 : vector<8x1xi32>
    %8 = vector.extract_strided_slice %2 {offsets = [1, 0], sizes = [1, 32], strides = [1, 1]} : vector<2x32xf32> to vector<1x32xf32>
    %9 = vector.shape_cast %7 : vector<8x1xi1> to vector<8x1xi1>
    %10 = vector.broadcast %9 : vector<8x1xi1> to vector<8x32xi1>
    %11 = vector.shape_cast %8 : vector<1x32xf32> to vector<1x32xf32>
    %12 = vector.broadcast %11 : vector<1x32xf32> to vector<8x32xf32>
    %13 = vector.shape_cast %4 : vector<1x32xf32> to vector<1x32xf32>
    %14 = vector.broadcast %13 : vector<1x32xf32> to vector<8x32xf32>
    %15 = arith.select %10, %12, %14 : vector<8x32xi1>, vector<8x32xf32>
    %16 = vector.extract_strided_slice %3 {offsets = [1, 0], sizes = [1, 4], strides = [1, 1]} : vector<2x4xf32> to vector<1x4xf32>
    %17 = vector.shape_cast %7 : vector<8x1xi1> to vector<8x1xi1>
    %18 = vector.broadcast %17 : vector<8x1xi1> to vector<8x4xi1>
    %19 = vector.shape_cast %16 : vector<1x4xf32> to vector<1x4xf32>
    %20 = vector.broadcast %19 : vector<1x4xf32> to vector<8x4xf32>
    %21 = vector.shape_cast %5 : vector<1x4xf32> to vector<1x4xf32>
    %22 = vector.broadcast %21 : vector<1x4xf32> to vector<8x4xf32>
    %23 = arith.select %18, %20, %22 : vector<8x4xi1>, vector<8x4xf32>
    %24 = arith.mulf %15, %0 : vector<8x32xf32>
    %c0_7 = arith.constant 0 : index
    %c0_8 = arith.constant 0 : index
    %25 = vector.load %arg5[%c0_7, %c0_8] : memref<32x4xf32, #tpu.memory_space<vmem>>, vector<32x4xf32>
    %cst = arith.constant dense<0.000000e+00> : vector<8x4xf32>
    %26 = tpu.matmul %24, %25, %cst {dimension_numbers = #tpu.dot_dimension_numbers<[1], [0], [0], [1], [0, 0, 1, 1], [], []>} : vector<8x32xf32>, vector<32x4xf32>, vector<8x4xf32> -> vector<8x4xf32>
    %27 = arith.addf %26, %23 : vector<8x4xf32>
    %c0_9 = arith.constant 0 : index
    %c0_10 = arith.constant 0 : index
    %28 = vector.load %arg6[%c0_9, %c0_10] : memref<8x4xf32, #tpu.memory_space<vmem>>, vector<8x4xf32>
    tpu.vector_store %arg6[%c0_9, %c0_10], %27 {strides = array<i32>} : memref<8x4xf32, #tpu.memory_space<vmem>>, vector<8x4xf32>,
    return
  }
  func.func @transform_0(%arg0: i32) -> (i32, i32) {
    %c0_i32 = arith.constant 0 : i32
    %c0_i32_0 = arith.constant 0 : i32
    return %arg0, %c0_i32 : i32, i32
  }
  func.func @transform_1(%arg0: i32) -> (i32, i32) {
    %c0_i32 = arith.constant 0 : i32
    %c0_i32_0 = arith.constant 0 : i32
    return %arg0, %c0_i32 : i32, i32
  }
  func.func @transform_2(%arg0: i32) -> (i32, i32) {
    %c0_i32 = arith.constant 0 : i32
    %c0_i32_0 = arith.constant 0 : i32
    %c0_i32_1 = arith.constant 0 : i32
    return %c0_i32, %c0_i32_0 : i32, i32
  }
  func.func @transform_3(%arg0: i32) -> (i32, i32) {
    %c0_i32 = arith.constant 0 : i32
    %c0_i32_0 = arith.constant 0 : i32
    %c0_i32_1 = arith.constant 0 : i32
    return %c0_i32, %c0_i32_0 : i32, i32
  }
  func.func @transform_4(%arg0: i32) -> (i32, i32) {
    %c0_i32 = arith.constant 0 : i32
    %c0_i32_0 = arith.constant 0 : i32
    %c0_i32_1 = arith.constant 0 : i32
    return %c0_i32, %c0_i32_0 : i32, i32
  }
  func.func @transform_5(%arg0: i32) -> (i32, i32) {
    %c0_i32 = arith.constant 0 : i32
    %c0_i32_0 = arith.constant 0 : i32
    return %arg0, %c0_i32 : i32, i32
  }
}

</mosaic_0001>

<llo_original>
// kernel: tpu_custom_call.1
$region0: #{tpu_custom_call.1}
  #allocation0 [shape = 'u32[]', space=smem, size = 0x4, offset = 0x4, fixed_abs, tag = 'smem constant byte address 0x4 - core index']
  #allocation1 [shape = 'u32[144,128]{1,0:T(1,128)}', space=vmem, size = 0x12000, scoped, tag = 'internal scratch']
  %s0 = inlined_call_operand.vmem [shape: f32[16,32], index: 0, kind: input, shape index: {}]
  %s1 = inlined_call_operand.vmem [shape: s32[16,1], index: 1, kind: input, shape index: {}]
  %s2 = inlined_call_operand.vmem [shape: f32[2,32], index: 2, kind: input, shape index: {}]
  %s3 = inlined_call_operand.vmem [shape: f32[2,4], index: 3, kind: input, shape index: {}]
  %s4 = inlined_call_operand.vmem [shape: f32[32,4], index: 4, kind: input, shape index: {}]
  %s5 = inlined_call_operand.vmem [shape: f32[16,4], index: 5, kind: output, shape index: {}]
  %s6 = sld [smem:[#allocation0]]
  $region53: #{tpu_custom_call.1} parent=0
    _
  %s8 = ssub.s32 1, %s6
  %s9 = scalar_select 0, %s8, %s6
  loop: start=0, step=1, limit=4
  $region2: #{tpu_custom_call.1} parent=0 // loop_pre_header
    _
  $region3: #{tpu_custom_call.1} parent=0 // loop_header
    %s11 = sphi 0, %s15
    %p12 = scmp.ge.s32.totalorder %s11, 4
    %s21 = sphi 0, %s23
    %s24 = sphi 0, %s21
    %s25 = sphi 0, %s24
    %s41 = sphi 0, %s25
    %s47 = sphi 0, %s49
    %s50 = sphi 0, %s47
    %s51 = sphi 0, %s50
    %s67 = sphi 0, %s51
    %s71 = sphi 0, %s71
    %s73 = sphi 0, %s71
    %s74 = sphi 0, %s73
    %s88 = sphi 0, %s74
    %s92 = sphi 0, %s92
    %s94 = sphi 0, %s92
    %s95 = sphi 0, %s94
    %s109 = sphi 0, %s95
    %s113 = sphi 0, %s113
    %s115 = sphi 0, %s113
    %s116 = sphi 0, %s115
    %s130 = sphi 0, %s116
    %s136 = sphi 0, %s138
    %s139 = sphi 0, %s136
    %s140 = sphi 0, %s139
    %s156 = sphi 0, %s140
  $region4: #{tpu_custom_call.1} parent=0 // loop_header_branch
    %14 = sbr.rel (%p12) target = $region8
  $region5: #{tpu_custom_call.1} parent=0 // loop_body
    %s16 = ssub.s32 %s11, 1
    %s17 = ssub.s32 %s11, 2
    %s18 = sadd.s32 %s11, 1
    %s19 = ssub.s32 %s11, %s18
    %p20 = scmp.eq.s32.totalorder %s19, 0
    %s22 = sadd.s32 %s21, 1
    %s23 = scalar_select %p20, %s21, %s22
    %p26 = pneg %p20
    %p27 = scmp.eq.s32.totalorder %s11, 1
    %p28 = por %p26, %p27
    %p29 = scmp.ne.s32.totalorder %s21, %s24
    %p30 = scmp.eq.s32.totalorder %s11, 0
    %p31 = por %p29, %p30
    %p32 = scmp.ne.s32.totalorder %s21, %s24
    %p33 = scmp.eq.s32.totalorder %s16, 1
    %p34 = por %p32, %p33
    %p35 = scmp.ne.s32.totalorder %s24, %s25
    %p36 = scmp.eq.s32.totalorder %s16, 0
    %p37 = por %p35, %p36
    %p38 = scmp.ne.s32.totalorder %s24, %s25
    %p39 = scmp.eq.s32.totalorder %s17, 1
    %p40 = por %p38, %p39
    %p42 = scmp.ne.s32.totalorder %s25, %s41
    %p43 = scmp.eq.s32.totalorder %s17, 0
    %p44 = por %p42, %p43
    %s45 = ssub.s32 %s11, %s18
    %p46 = scmp.eq.s32.totalorder %s45, 0
    %s48 = sadd.s32 %s47, 1
    %s49 = scalar_select %p46, %s47, %s48
    %p52 = pneg %p46
    %p53 = scmp.eq.s32.totalorder %s11, 1
    %p54 = por %p52, %p53
    %p55 = scmp.ne.s32.totalorder %s47, %s50
    %p56 = scmp.eq.s32.totalorder %s11, 0
    %p57 = por %p55, %p56
    %p58 = scmp.ne.s32.totalorder %s47, %s50
    %p59 = scmp.eq.s32.totalorder %s16, 1
    %p60 = por %p58, %p59
    %p61 = scmp.ne.s32.totalorder %s50, %s51
    %p62 = scmp.eq.s32.totalorder %s16, 0
    %p63 = por %p61, %p62
    %p64 = scmp.ne.s32.totalorder %s50, %s51
    %p65 = scmp.eq.s32.totalorder %s17, 1
    %p66 = por %p64, %p65
    %p68 = scmp.ne.s32.totalorder %s51, %s67
    %p69 = scmp.eq.s32.totalorder %s17, 0
    %p70 = por %p68, %p69
    %s72 = sadd.s32 %s71, 1
    %p75 = scmp.eq.s32.totalorder %s11, 1
    %p76 = scmp.ne.s32.totalorder %s71, %s73
    %p77 = scmp.eq.s32.totalorder %s11, 0
    %p78 = por %p76, %p77
    %p79 = scmp.ne.s32.totalorder %s71, %s73
    %p80 = scmp.eq.s32.totalorder %s16, 1
    %p81 = por %p79, %p80
    %p82 = scmp.ne.s32.totalorder %s73, %s74
    %p83 = scmp.eq.s32.totalorder %s16, 0
    %p84 = por %p82, %p83
    %p85 = scmp.ne.s32.totalorder %s73, %s74
    %p86 = scmp.eq.s32.totalorder %s17, 1
    %p87 = por %p85, %p86
    %p89 = scmp.ne.s32.totalorder %s74, %s88
    %p90 = scmp.eq.s32.totalorder %s17, 0
    %p91 = por %p89, %p90
    %s93 = sadd.s32 %s92, 1
    %p96 = scmp.eq.s32.totalorder %s11, 1
    %p97 = scmp.ne.s32.totalorder %s92, %s94
    %p98 = scmp.eq.s32.totalorder %s11, 0
    %p99 = por %p97, %p98
    %p100 = scmp.ne.s32.totalorder %s92, %s94
    %p101 = scmp.eq.s32.totalorder %s16, 1
    %p102 = por %p100, %p101
    %p103 = scmp.ne.s32.totalorder %s94, %s95
    %p104 = scmp.eq.s32.totalorder %s16, 0
    %p105 = por %p103, %p104
    %p106 = scmp.ne.s32.totalorder %s94, %s95
    %p107 = scmp.eq.s32.totalorder %s17, 1
    %p108 = por %p106, %p107
    %p110 = scmp.ne.s32.totalorder %s95, %s109
    %p111 = scmp.eq.s32.totalorder %s17, 0
    %p112 = por %p110, %p111
    %s114 = sadd.s32 %s113, 1
    %p117 = scmp.eq.s32.totalorder %s11, 1
    %p118 = scmp.ne.s32.totalorder %s113, %s115
    %p119 = scmp.eq.s32.totalorder %s11, 0
    %p120 = por %p118, %p119
    %p121 = scmp.ne.s32.totalorder %s113, %s115
    %p122 = scmp.eq.s32.totalorder %s16, 1
    %p123 = por %p121, %p122
    %p124 = scmp.ne.s32.totalorder %s115, %s116
    %p125 = scmp.eq.s32.totalorder %s16, 0
    %p126 = por %p124, %p125
    %p127 = scmp.ne.s32.totalorder %s115, %s116
    %p128 = scmp.eq.s32.totalorder %s17, 1
    %p129 = por %p127, %p128
    %p131 = scmp.ne.s32.totalorder %s116, %s130
    %p132 = scmp.eq.s32.totalorder %s17, 0
    %p133 = por %p131, %p132
    %s134 = ssub.s32 %s11, %s18
    %p135 = scmp.eq.s32.totalorder %s134, 0
    %s137 = sadd.s32 %s136, 1
    %s138 = scalar_select %p135, %s136, %s137
    %p141 = pneg %p135
    %p142 = scmp.eq.s32.totalorder %s11, 1
    %p143 = por %p141, %p142
    %p144 = scmp.ne.s32.totalorder %s136, %s139
    %p145 = scmp.eq.s32.totalorder %s11, 0
    %p146 = por %p144, %p145
    %p147 = scmp.ne.s32.totalorder %s136, %s139
    %p148 = scmp.eq.s32.totalorder %s16, 1
    %p149 = por %p147, %p148
    %p150 = scmp.ne.s32.totalorder %s139, %s140
    %p151 = scmp.eq.s32.totalorder %s16, 0
    %p152 = por %p150, %p151
    %p153 = scmp.ne.s32.totalorder %s139, %s140
    %p154 = scmp.eq.s32.totalorder %s17, 1
    %p155 = por %p153, %p154
    %p157 = scmp.ne.s32.totalorder %s140, %s156
    %p158 = scmp.eq.s32.totalorder %s17, 0
    %p159 = por %p157, %p158
    %p160 = scmp.le.s32.totalorder 1, %s11
    %p161 = scmp.lt.s32.totalorder %s11, 3
    %p162 = pnand %p160, %p161
    %p163 = pneg %p162
    // Predicated region
    $region9: #{tpu_custom_call.1} parent=5 // pred_check
      _
    $region10: #{tpu_custom_call.1} parent=5 // pred_check_branch
      %165 = sbr.rel (%p162) target = $region12
    $region11: #{tpu_custom_call.1} parent=5 // pred_region
      %s166 = ssub.s32 %s11, 1
      // Predicated region
      $region13: #{tpu_custom_call.1} parent=11 // pred_check
        %p167 = pneg %p84
      $region14: #{tpu_custom_call.1} parent=11 // pred_check_branch
        %169 = sbr.rel (%p167) target = $region16
      $region15: #{tpu_custom_call.1} parent=11 // pred_region
        _
      $region16: #{tpu_custom_call.1} parent=11 // pred_fallthru
        _
      // Predicated region
      $region17: #{tpu_custom_call.1} parent=11 // pred_check
        %p170 = pneg %p105
      $region18: #{tpu_custom_call.1} parent=11 // pred_check_branch
        %172 = sbr.rel (%p170) target = $region20
      $region19: #{tpu_custom_call.1} parent=11 // pred_region
        _
      $region20: #{tpu_custom_call.1} parent=11 // pred_fallthru
        _
      // Predicated region
      $region21: #{tpu_custom_call.1} parent=11 // pred_check
        %p173 = pneg %p126
      $region22: #{tpu_custom_call.1} parent=11 // pred_check_branch
        %175 = sbr.rel (%p173) target = $region24
      $region23: #{tpu_custom_call.1} parent=11 // pred_region
        _
      $region24: #{tpu_custom_call.1} parent=11 // pred_fallthru
        _
    $region12: #{tpu_custom_call.1} parent=5 // pred_fallthru
      _
    %p176 = scmp.lt.s32.totalorder %s11, 2
    // Predicated region
    $region25: #{tpu_custom_call.1} parent=5 // pred_check
      %p177 = pneg %p176
    $region26: #{tpu_custom_call.1} parent=5 // pred_check_branch
      %179 = sbr.rel (%p177) target = $region28
    $region27: #{tpu_custom_call.1} parent=5 // pred_region
      // Predicated region
      $region29: #{tpu_custom_call.1} parent=27 // pred_check
        %p180 = pneg %p31
      $region30: #{tpu_custom_call.1} parent=27 // pred_check_branch
        %182 = sbr.rel (%p180) target = $region32
      $region31: #{tpu_custom_call.1} parent=27 // pred_region
        %p183 = scmp.lt.s32.totalorder %s11, 1
        %s184 = scalar_select %p183, %s11, 1
        %s185 = smul.addr %s184, 8
        %s186 = scalar_lea.vmem %s0, %s185
      $region32: #{tpu_custom_call.1} parent=27 // pred_fallthru
        _
      // Predicated region
      $region33: #{tpu_custom_call.1} parent=27 // pred_check
        %p187 = pneg %p57
      $region34: #{tpu_custom_call.1} parent=27 // pred_check_branch
        %189 = sbr.rel (%p187) target = $region36
      $region35: #{tpu_custom_call.1} parent=27 // pred_region
        %p190 = scmp.lt.s32.totalorder %s11, 1
        %s191 = scalar_select %p190, %s11, 1
        %s192 = smul.addr %s191, 8
        %s193 = scalar_lea.vmem %s1, %s192
      $region36: #{tpu_custom_call.1} parent=27 // pred_fallthru
        _
    $region28: #{tpu_custom_call.1} parent=5 // pred_fallthru
      _
    %p194 = scmp.le.s32.totalorder 1, %s11
    %p195 = scmp.lt.s32.totalorder %s11, 3
    %p196 = pnand %p194, %p195
    %p197 = pneg %p196
    // Predicated region
    $region37: #{tpu_custom_call.1} parent=5 // pred_check
      _
    $region38: #{tpu_custom_call.1} parent=5 // pred_check_branch
      %199 = sbr.rel (%p196) target = $region40
    $region39: #{tpu_custom_call.1} parent=5 // pred_region
      %s200 = ssub.s32 %s11, 1
      %p201 = scmp.lt.s32.totalorder %s16, 1
      %s202 = scalar_select %p201, %s16, 1
      %s203 = smul.addr %s202, 8
      %s204 = scalar_lea.vmem %s0, %s203
      %p205 = pneg %p37
      %p206 = pneg %p34
      %p207 = scmp.lt.s32.totalorder %s16, 1
      %s208 = scalar_select %p207, %s16, 1
      %s209 = smul.addr %s208, 8
      %s210 = scalar_lea.vmem %s1, %s209
      %p211 = pneg %p63
      %p212 = pneg %p60
      %p213 = pneg %p84
      %p214 = pneg %p81
      %p215 = pneg %p105
      %p216 = pneg %p102
      %p217 = pneg %p126
      %p218 = pneg %p123
      %p219 = pneg %p152
      %p220 = pneg %p149
      %p221 = scmp.lt.s32.totalorder %s16, 1
      %s222 = scalar_select %p221, %s16, 1
      %s223 = smul.addr %s222, 8
      %s224 = scalar_lea.vmem %s5, %s223
      %p225 = scmp.lt.s32.totalorder %s16, 1
      %s226 = scalar_select %p225, %s16, 1
      %s227 = smul.addr %s226, 8
      %s228 = scalar_lea.vmem %s0, %s227
      %p229 = scmp.lt.s32.totalorder %s16, 1
      %s230 = scalar_select %p229, %s16, 1
      %s231 = smul.addr %s230, 8
      %s232 = scalar_lea.vmem %s1, %s231
      %p233 = scmp.lt.s32.totalorder %s16, 1
      %s234 = scalar_select %p233, %s16, 1
      %s235 = smul.addr %s234, 8
      %s236 = scalar_lea.vmem %s5, %s235
      %v237 = vld [vmem:[%s228] sm:$0xff]
      %v238 = vld [vmem:[%s232] sm:$0xff]
      %v239 = vld [vmem:[%s2] sm:$0x3]
      %v240 = vld [vmem:[%s3] sm:$0x3]
      %vm241 = vcmp.eq.s32.totalorder %v238, 1
      %v242 = vsel %vm241, 1, 0
      %243 = vset.pattern.permute.xlu0 0
      %244 = vperm.xlu0 %243, %v242
      %v245 = vpop.permute.xlu0 %244
      %vm246 = vcmp.eq.s32.totalorder %v245, 1
      %v247 = vlaneseq
      %v248 = vshrl.u32 %v247, 7
      %v249 = vsub.s32 1, %v248
      %v250 = vrot.slane %v239, %v249
      %v251 = vlaneseq
      %v252 = vshrl.u32 %v251, 7
      %v253 = vsub.s32 0, %v252
      %v254 = vrot.slane %v239, %v253
      %v255 = vsel %vm246, %v250, %v254
      %v256 = vlaneseq
      %v257 = vshrl.u32 %v256, 7
      %v258 = vsub.s32 1, %v257
      %v259 = vrot.slane %v240, %v258
      %v260 = vlaneseq
      %v261 = vshrl.u32 %v260, 7
      %v262 = vsub.s32 0, %v261
      %v263 = vrot.slane %v240, %v262
      %v264 = vsel %vm246, %v259, %v263
      %v265 = vmul.f32 %v255, %v237
      %v266 = vld [vmem:[%s4] sm:$0xff]
      %v267 = vld [vmem:[%s4 + $0x8] sm:$0xff]
      %v268 = vld [vmem:[%s4 + $0x10] sm:$0xff]
      %v269 = vld [vmem:[%s4 + $0x18] sm:$0xff]
      %vm270 = vcmask 261120
      %v272 = vsel %vm270, %v265, 0
      %274 = vmatprep.subr.mxu0 0.0
      %275 = vmatpush1.msra.mxu0 %v266
      %276 = vmatprep.subr.mxu0 0.0
      %277 = vmatpush1.msra.mxu0 %v267
      %278 = vmatprep.subr.mxu0 0.0
      %279 = vmatpush1.msra.mxu0 %v268
      %280 = vmatprep.subr.mxu0 0.0
      %281 = vmatpush1.msra.mxu0 %v269
      %282 = vmatprep.subr.mxu0 0.0
      %283 = vmatpush1.msra.mxu0 0.0
      %284 = vmatprep.subr.mxu0 0.0
      %285 = vmatpush1.msra.mxu0 0.0
      %286 = vmatprep.subr.mxu0 0.0
      %287 = vmatpush1.msra.mxu0 0.0
      %288 = vmatprep.subr.mxu0 0.0
      %289 = vmatpush1.msra.mxu0 0.0
      %290 = vmatprep.subr.mxu0 0.0
      %291 = vmatpush1.msra.mxu0 0.0
      %292 = vmatprep.subr.mxu0 0.0
      %293 = vmatpush1.msra.mxu0 0.0
      %294 = vmatprep.subr.mxu0 0.0
      %295 = vmatpush1.msra.mxu0 0.0
      %296 = vmatprep.subr.mxu0 0.0
      %297 = vmatpush1.msra.mxu0 0.0
      %298 = vmatprep.subr.mxu0 0.0
      %299 = vmatpush1.msra.mxu0 0.0
      %300 = vmatprep.subr.mxu0 0.0
      %301 = vmatpush1.msra.mxu0 0.0
      %302 = vmatprep.subr.mxu0 0.0
      %303 = vmatpush1.msra.mxu0 0.0
      %304 = vmatprep.subr.mxu0 0.0
      %305 = vmatpush1.msra.mxu0 0.0
      %306 = vmatprep.subr.mxu0 0.0
      %307 = vmatpush1.msra.mxu0 0.0
      %308 = vmatprep.subr.mxu0 0.0
      %309 = vmatpush1.msra.mxu0 0.0
      %310 = vmatprep.subr.mxu0 0.0
      %311 = vmatpush1.msra.mxu0 0.0
      %312 = vmatprep.subr.mxu0 0.0
      %313 = vmatpush1.msra.mxu0 0.0
      %314 = vmatprep.subr.mxu0 0.0
      %315 = vmatpush1.msra.mxu0 0.0
      %316 = vmatprep.subr.mxu0 0.0
      %317 = vmatpush1.msra.mxu0 0.0
      %318 = vmatprep.subr.mxu0 0.0
      %319 = vmatpush1.msra.mxu0 0.0
      %320 = vmatprep.subr.mxu0 0.0
      %321 = vmatpush1.msra.mxu0 0.0
      %322 = vmatprep.subr.mxu0 0.0
      %323 = vmatpush1.msra.mxu0 0.0
      %324 = vmatprep.subr.mxu0 0.0
      %325 = vmatpush1.msra.mxu0 0.0
      %326 = vmatprep.subr.mxu0 0.0
      %327 = vmatpush1.msra.mxu0 0.0
      %328 = vmatprep.subr.mxu0 0.0
      %329 = vmatpush1.msra.mxu0 0.0
      %330 = vmatprep.subr.mxu0 0.0
      %331 = vmatpush1.msra.mxu0 0.0
      %332 = vmatprep.subr.mxu0 0.0
      %333 = vmatpush1.msra.mxu0 0.0
      %334 = vmatprep.subr.mxu0 0.0
      %335 = vmatpush1.msra.mxu0 0.0
      %336 = vmatprep.subr.mxu0 0.0
      %337 = vmatpush1.msra.mxu0 0.0
      %338 = vmatprep.mubr.f32.mxu0 0.0
      %339 = vmatmul.mubr.f32.gmra.mrb[0].mxu0 %v272
      %v340 = vpop.f32.mrb[0].mxu0
      %v341 = vadd.f32 %v264, %v340
      %v342 = vpop.f32.mrb[0].mxu0
      %343 = vdwg.mxu0
      %vm344 = vcmask 31744
      %345 = vst.msk [vmem:[%s236] sm:$0xff] %vm344, %v341
      %p346 = scmp.lt.s32.totalorder %s16, 1
      %s347 = scalar_select %p346, %s16, 1
      %s348 = smul.addr %s347, 8
      %s349 = scalar_lea.vmem %s5, %s348
      // Predicated region
      $region41: #{tpu_custom_call.1} parent=39 // pred_check
        %p350 = pneg %p149
      $region42: #{tpu_custom_call.1} parent=39 // pred_check_branch
        %352 = sbr.rel (%p350) target = $region44
      $region43: #{tpu_custom_call.1} parent=39 // pred_region
        _
      $region44: #{tpu_custom_call.1} parent=39 // pred_fallthru
        _
    $region40: #{tpu_custom_call.1} parent=5 // pred_fallthru
      _
    %p353 = scmp.le.s32.totalorder 2, %s11
    // Predicated region
    $region45: #{tpu_custom_call.1} parent=5 // pred_check
      %p354 = pneg %p353
    $region46: #{tpu_custom_call.1} parent=5 // pred_check_branch
      %356 = sbr.rel (%p354) target = $region48
    $region47: #{tpu_custom_call.1} parent=5 // pred_region
      %s357 = ssub.s32 %s11, 2
      // Predicated region
      $region49: #{tpu_custom_call.1} parent=47 // pred_check
        %p358 = pneg %p155
      $region50: #{tpu_custom_call.1} parent=47 // pred_check_branch
        %360 = sbr.rel (%p358) target = $region52
      $region51: #{tpu_custom_call.1} parent=47 // pred_region
        %p361 = scmp.lt.s32.totalorder %s17, 1
        %s362 = scalar_select %p361, %s17, 1
        %s363 = smul.addr %s362, 8
        %s364 = scalar_lea.vmem %s5, %s363
      $region52: #{tpu_custom_call.1} parent=47 // pred_fallthru
        _
    $region48: #{tpu_custom_call.1} parent=5 // pred_fallthru
      _
  $region6: #{tpu_custom_call.1} parent=0 // loop_footer
    %s15 = sadd.s32 1, %s11
  $region7: #{tpu_custom_call.1} parent=0 // loop_footer_branch
    %10 = sbr.rel target = $region3
  $region8: #{tpu_custom_call.1} parent=0 // loop_exit
    _

</llo_original>
